<compile_context>
chip_gen: v5e
topology: v5e:2x2
jax: 0.10.0
libtpu: 0.0.40
codegen_flags: <defaults>
</compile_context>

<pallas_src>
import jax
import jax.numpy as jnp
from jax.experimental import pallas as pl
from jax.experimental.pallas import tpu as pltpu


def conv1x1_sigmoid_kernel(x_ref, w_ref, b_ref, o_ref):
    # x_ref: [tm, Cin] (input dtype), w_ref: [Cin, tn] bf16, b_ref: [1, tn] f32,
    # o_ref: [tm, tn].  Cast x to the weight dtype in-kernel (rides on VPU),
    # MXU matmul with f32 accumulation, f32 bias + sigmoid epilogue.
    x = x_ref[...].astype(w_ref.dtype)
    y = jnp.dot(x, w_ref[...], preferred_element_type=jnp.float32)
    y = y + b_ref[...]
    o_ref[...] = jax.nn.sigmoid(y).astype(o_ref.dtype)


def prepare_conv1x1_params(weight_oi, bias):
    """One-time parameter prep (do at init, NOT per call).

    weight_oi: [Cout, Cin] -> returns W^T as [Cin, Cout] bf16 and bias as
    [1, Cout] f32, the layouts the kernel consumes directly.
    """
    w_mat = jnp.transpose(weight_oi, (1, 0)).astype(jnp.bfloat16)   # [Cin, Cout]
    b_mat = jnp.asarray(bias, dtype=jnp.float32).reshape(1, -1)     # [1, Cout]
    return w_mat, b_mat


def _pick_tiles(M, Cin, Cout, x_bytes, w_bytes, out_bytes,
                budget_bytes=22 * 1024 * 1024):
    """Pick (tm, tn) so the double-buffered footprint stays well under VMEM."""
    # Rows per block: full M for small inputs (the module's case is M == 1),
    # otherwise 512-row tiles (near the ~85% HBM-roofline band; ~10.7 MiB
    # double-buffered at tn = 2304, safe even on v7x's 64 MiB VMEM).
    tm = M if M <= 512 else 512
    # Output channels per block: prefer the full Cout (collapses the Cout grid
    # so the weight is fetched exactly once), else the largest multiple of 128
    # dividing Cout that fits the budget.
    cands = [Cout] + [k * 128 for k in range(Cout // 128, 0, -1)
                      if Cout % (k * 128) == 0]
    for tn in cands:
        footprint = 2 * (tm * Cin * x_bytes       # x tile (input dtype)
                         + Cin * tn * w_bytes     # weight tile (bf16)
                         + tn * 4                 # bias tile (f32)
                         + tm * tn * out_bytes)   # output tile
        if footprint <= budget_bytes:
            return tm, tn
    return tm, 128


def conv1x1_sigmoid(x_nchw, w_mat, b_mat, *, tm=None, tn=None, out_dtype=None):
    """x_nchw: [N, Cin, H, W]; w_mat: [Cin, Cout] (bf16, from prepare_...);
    b_mat: [1, Cout] f32.  Returns [N, Cout, H, W]."""
    N, Cin, H, W = x_nchw.shape
    Cout = w_mat.shape[1]
    M = N * H * W
    out_dtype = x_nchw.dtype if out_dtype is None else out_dtype

    # --- glue (plain JAX; a pure reshape for the module's H = W = 1 case) ---
    x_mat = jnp.transpose(x_nchw, (0, 2, 3, 1)).reshape(M, Cin)

    x_bytes = jnp.dtype(x_mat.dtype).itemsize
    w_bytes = jnp.dtype(w_mat.dtype).itemsize
    out_bytes = jnp.dtype(out_dtype).itemsize

    if tm is None or tn is None:
        ptm, ptn = _pick_tiles(M, Cin, Cout, x_bytes, w_bytes, out_bytes)
        tm = ptm if tm is None else tm
        tn = ptn if tn is None else tn
    assert Cout % tn == 0 and (tn % 128 == 0 or tn == Cout)

    # Zero-pad ragged M so the row grid is exact (padding sliced off below).
    M_pad = pl.cdiv(M, tm) * tm
    if M_pad != M:
        x_mat = jnp.pad(x_mat, ((0, M_pad - M), (0, 0)))

    grid = (M_pad // tm, Cout // tn)

    cost = pl.CostEstimate(
        flops=2 * M_pad * Cin * Cout,
        transcendentals=M_pad * Cout,                   # sigmoid -> exp on EUP
        bytes_accessed=(M_pad * Cin * x_bytes           # x
                        + Cin * Cout * w_bytes          # W (bf16)
                        + Cout * 4                      # bias (f32)
                        + M_pad * Cout * out_bytes),    # y
    )

    y_mat = pl.pallas_call(
        conv1x1_sigmoid_kernel,
        out_shape=jax.ShapeDtypeStruct((M_pad, Cout), out_dtype),
        grid_spec=pltpu.PrefetchScalarGridSpec(
            num_scalar_prefetch=0,
            grid=grid,
            in_specs=[
                pl.BlockSpec((tm, Cin), lambda i, j: (i, 0)),   # x rows
                # Weight / bias block index is constant in i -> Pallas elides
                # the re-DMA across row steps (weight fetched once per j).
                pl.BlockSpec((Cin, tn), lambda i, j: (0, j)),   # weight tile
                pl.BlockSpec((1, tn), lambda i, j: (0, j)),     # bias tile
            ],
            out_specs=pl.BlockSpec((tm, tn), lambda i, j: (i, j)),
        ),
        compiler_params=pltpu.CompilerParams(
            dimension_semantics=("parallel", "parallel"),
            vmem_limit_bytes=32 * 1024 * 1024,
        ),
        cost_estimate=cost,
    )(x_mat, w_mat, b_mat)

    y_mat = y_mat[:M]
    # Back to NCHW (a pure reshape when H = W = 1).
    return jnp.transpose(y_mat.reshape(N, H, W, Cout), (0, 3, 1, 2))


if __name__ == "__main__":
    CIN, COUT = 96, 2304
    N, H, W = 1, 1, 1                 # shapes implied by the module's forward

    key = jax.random.PRNGKey(0)
    kx, kw, kb = jax.random.split(key, 3)

    x = jax.random.normal(kx, (N, CIN, H, W), dtype=jnp.float32)
    weight = jax.random.normal(kw, (COUT, CIN), dtype=jnp.float32) * 0.05
    bias = jax.random.normal(kb, (COUT,), dtype=jnp.float32) * 0.05

    # One-time parameter prep (as at module init) — not part of the per-call path.
    w_mat, b_mat = prepare_conv1x1_params(weight, bias)

    fwd = jax.jit(conv1x1_sigmoid)
    out = fwd(x, w_mat, b_mat)
    jax.block_until_ready(out)
    assert out.shape == (N, COUT, H, W)
    assert out.dtype == x.dtype

    # Reference with the same bf16 operand rounding (accumulation in f32).
    xb = x.astype(jnp.bfloat16).astype(jnp.float32)
    wb = weight.astype(jnp.bfloat16).astype(jnp.float32)
    ref = jax.nn.sigmoid(
        jnp.einsum("nchw,oc->nohw", xb, wb, preferred_element_type=jnp.float32)
        + bias.reshape(1, COUT, 1, 1)
    )
    assert jnp.allclose(out, ref, atol=1e-3, rtol=1e-3)

    # Loose sanity check against the original full-f32 module math.
    ref_f32 = jax.nn.sigmoid(
        jnp.einsum("nchw,oc->nohw", x, weight) + bias.reshape(1, COUT, 1, 1)
    )
    assert jnp.allclose(out, ref_f32, atol=5e-3, rtol=5e-3)

    print("KERNEL_OK")
</pallas_src>

<mosaic_0001>
module attributes {stable_mosaic.version = 11 : i64} {
  func.func @conv1x1_sigmoid_kernel(%arg0: i32, %arg1: i32, %arg2: memref<1x96xf32, #tpu.memory_space<vmem>>, %arg3: memref<96x2304xbf16, #tpu.memory_space<vmem>>, %arg4: memref<1x2304xf32, #tpu.memory_space<vmem>>, %arg5: memref<1x2304xf32, #tpu.memory_space<vmem>>) attributes {dimension_semantics = [#tpu.dimension_semantics<parallel>, #tpu.dimension_semantics<parallel>], iteration_bounds = array<i64: 1, 1>, scalar_prefetch = 0 : i64, scratch_operands = 0 : i64, tpu.core_type = #tpu.core_type<tc>, window_params = [{transform_indices = @transform_0, window_bounds = array<i64: 1, 96>}, {transform_indices = @transform_1, window_bounds = array<i64: 96, 2304>}, {transform_indices = @transform_2, window_bounds = array<i64: 1, 2304>}, {transform_indices = @transform_3, window_bounds = array<i64: 1, 2304>}]} {
    %c0 = arith.constant 0 : index
    %c0_0 = arith.constant 0 : index
    %0 = vector.load %arg2[%c0, %c0_0] : memref<1x96xf32, #tpu.memory_space<vmem>>, vector<1x96xf32>
    %1 = arith.truncf %0 : vector<1x96xf32> to vector<1x96xbf16>
    %c0_1 = arith.constant 0 : index
    %c0_2 = arith.constant 0 : index
    %2 = vector.load %arg3[%c0_1, %c0_2] : memref<96x2304xbf16, #tpu.memory_space<vmem>>, vector<96x2304xbf16>
    %cst = arith.constant dense<0.000000e+00> : vector<1x2304xf32>
    %3 = tpu.matmul %1, %2, %cst {dimension_numbers = #tpu.dot_dimension_numbers<[1], [0], [0], [1], [0, 0, 1, 1], [], []>} : vector<1x96xbf16>, vector<96x2304xbf16>, vector<1x2304xf32> -> vector<1x2304xf32>
    %c0_3 = arith.constant 0 : index
    %c0_4 = arith.constant 0 : index
    %4 = vector.load %arg4[%c0_3, %c0_4] : memref<1x2304xf32, #tpu.memory_space<vmem>>, vector<1x2304xf32>
    %5 = arith.addf %3, %4 : vector<1x2304xf32>
    %6 = arith.negf %5 : vector<1x2304xf32>
    %7 = math.exp %6 : vector<1x2304xf32>
    %cst_5 = arith.constant 1.000000e+00 : f32
    %8 = vector.broadcast %cst_5 : f32 to vector<1x2304xf32>
    %9 = arith.addf %8, %7 : vector<1x2304xf32>
    %10 = arith.divf %8, %9 : vector<1x2304xf32>
    %c0_6 = arith.constant 0 : index
    %c0_7 = arith.constant 0 : index
    %11 = vector.load %arg5[%c0_6, %c0_7] : memref<1x2304xf32, #tpu.memory_space<vmem>>, vector<1x2304xf32>
    tpu.vector_store %arg5[%c0_6, %c0_7], %10 {strides = array<i32>} : memref<1x2304xf32, #tpu.memory_space<vmem>>, vector<1x2304xf32>,
    return
  }
  func.func @transform_0(%arg0: i32, %arg1: i32) -> (i32, i32) {
    %c0_i32 = arith.constant 0 : i32
    %c0_i32_0 = arith.constant 0 : i32
    return %arg0, %c0_i32 : i32, i32
  }
  func.func @transform_1(%arg0: i32, %arg1: i32) -> (i32, i32) {
    %c0_i32 = arith.constant 0 : i32
    %c0_i32_0 = arith.constant 0 : i32
    return %c0_i32, %arg1 : i32, i32
  }
  func.func @transform_2(%arg0: i32, %arg1: i32) -> (i32, i32) {
    %c0_i32 = arith.constant 0 : i32
    %c0_i32_0 = arith.constant 0 : i32
    return %c0_i32, %arg1 : i32, i32
  }
  func.func @transform_3(%arg0: i32, %arg1: i32) -> (i32, i32) {
    %c0_i32 = arith.constant 0 : i32
    return %arg0, %arg1 : i32, i32
  }
}

</mosaic_0001>

<llo_original>
// kernel: conv1x1_sigmoid.1
$region0: #{conv1x1_sigmoid.1}
  #allocation0 [shape = 'u32[]', space=smem, size = 0x4, offset = 0x4, fixed_abs, tag = 'smem constant byte address 0x4 - core index']
  #allocation1 [shape = 'u32[72,128]{1,0:T(1,128)}', space=vmem, size = 0x9000, scoped, tag = 'internal scratch']
  %s0 = inlined_call_operand.hbm [shape: f32[1,96], index: 0, kind: input, shape index: {}]
  %s1 = inlined_call_operand.hbm [shape: bf16[96,2304], index: 1, kind: input, shape index: {}]
  %s2 = inlined_call_operand.hbm [shape: f32[1,2304], index: 2, kind: input, shape index: {}]
  %s3 = inlined_call_operand.hbm [shape: f32[1,2304], index: 3, kind: output, shape index: {}]
  %s4 = sld [smem:[#allocation0]]
  $region34: #{conv1x1_sigmoid.1} parent=0
    _
  %s6 = ssub.s32 1, %s4
  %s7 = scalar_select 0, %s6, %s4
  $region1: #{conv1x1_sigmoid.1} parent=0
    #allocation2 [shape = 'u8[512]{0}', space=vmem, size = 0x400, scoped, tag = 'input window, operand 0, single buffered']
    #allocation3 [shape = 's32[1]{0}', space=sflag, size = 0x4, scoped, tag = 'scoped memory for conv1x1_sigmoid.1']
    #allocation4 [shape = 's32[1]{0}', space=sflag, size = 0x4, scoped, tag = 'scoped memory for conv1x1_sigmoid.1']
    #allocation5 [shape = 'u8[442368]{0}', space=vmem, size = 0x6c000, scoped, tag = 'input window, operand 1, single buffered']
    #allocation6 [shape = 's32[1]{0}', space=sflag, size = 0x4, scoped, tag = 'scoped memory for conv1x1_sigmoid.1']
    #allocation7 [shape = 'u8[9216]{0}', space=vmem, size = 0x2400, scoped, tag = 'input window, operand 2, single buffered']
    #allocation8 [shape = 'u8[9216]{0}', space=vmem, size = 0x2400, scoped, tag = 'output window, operand 0, single buffered']
    %8 = vsyncpa [#allocation3], 0
    %9 = vsyncpa [#allocation6], 0
    %10 = vsyncpa [#allocation4], 0
    // Predicated region
    $region2: #{conv1x1_sigmoid.1} parent=1 // pred_check
      _
    $region3: #{conv1x1_sigmoid.1} parent=1 // pred_check_branch
      %12 = sbr.rel (0) target = $region5
    $region4: #{conv1x1_sigmoid.1} parent=1 // pred_region
      %14 = vsyncadd [#allocation3], 0
      %s16 = sshll.u32 %s0, 4
      %s17 = int_to_ptr.hbm [resolvable:$true] %s16
      %s18 = sshll.u32 [#allocation2], 4
      %s19 = int_to_ptr.vmem [resolvable:$true] %s18
      %21 = dma.hbm_to_vmem [thread:$0]  %s17, 16, %s19, [#allocation3]
    $region5: #{conv1x1_sigmoid.1} parent=1 // pred_fallthru
      _
    // Predicated region
    $region6: #{conv1x1_sigmoid.1} parent=1 // pred_check
      _
    $region7: #{conv1x1_sigmoid.1} parent=1 // pred_check_branch
      %23 = sbr.rel (0) target = $region9
    $region8: #{conv1x1_sigmoid.1} parent=1 // pred_region
      %25 = vsyncadd [#allocation6], 0
      %s26 = sshll.u32 %s1, 4
      %s27 = int_to_ptr.hbm [resolvable:$true] %s26
      %s28 = sshll.u32 [#allocation5], 4
      %s29 = int_to_ptr.vmem [resolvable:$true] %s28
      %34 = dma.hbm_to_vmem [thread:$0]  %s27, 13824, %s29, [#allocation6], 1152, 1152, 72
    $region9: #{conv1x1_sigmoid.1} parent=1 // pred_fallthru
      _
    // Predicated region
    $region10: #{conv1x1_sigmoid.1} parent=1 // pred_check
      _
    $region11: #{conv1x1_sigmoid.1} parent=1 // pred_check_branch
      %36 = sbr.rel (0) target = $region13
    $region12: #{conv1x1_sigmoid.1} parent=1 // pred_region
      %38 = vsyncadd [#allocation6], 0
      %s40 = sshll.u32 %s2, 4
      %s41 = int_to_ptr.hbm [resolvable:$true] %s40
      %s42 = sshll.u32 [#allocation7], 4
      %s43 = int_to_ptr.vmem [resolvable:$true] %s42
      %45 = dma.hbm_to_vmem [thread:$0]  %s41, 288, %s43, [#allocation6]
    $region13: #{conv1x1_sigmoid.1} parent=1 // pred_fallthru
      _
    // Predicated region
    $region14: #{conv1x1_sigmoid.1} parent=1 // pred_check
      _
    $region15: #{conv1x1_sigmoid.1} parent=1 // pred_check_branch
      %47 = sbr.rel (0) target = $region17
    $region16: #{conv1x1_sigmoid.1} parent=1 // pred_region
      %49 = dma.done [#allocation3], 16
    $region17: #{conv1x1_sigmoid.1} parent=1 // pred_fallthru
      _
    // Predicated region
    $region18: #{conv1x1_sigmoid.1} parent=1 // pred_check
      _
    $region19: #{conv1x1_sigmoid.1} parent=1 // pred_check_branch
      %51 = sbr.rel (0) target = $region21
    $region20: #{conv1x1_sigmoid.1} parent=1 // pred_region
      %53 = dma.done [#allocation6], 13824
    $region21: #{conv1x1_sigmoid.1} parent=1 // pred_fallthru
      _
    // Predicated region
    $region22: #{conv1x1_sigmoid.1} parent=1 // pred_check
      _
    $region23: #{conv1x1_sigmoid.1} parent=1 // pred_check_branch
      %55 = sbr.rel (0) target = $region25
    $region24: #{conv1x1_sigmoid.1} parent=1 // pred_region
      %57 = dma.done [#allocation6], 288
    $region25: #{conv1x1_sigmoid.1} parent=1 // pred_fallthru
      _
    %v59 = vld [vmem:[#allocation2] sm:$0x1]
    %v60 = vpack.c.bf16 %v59, %v59
    %v61 = vld [vmem:[#allocation5] sm:$0xff]
    %v62 = vld [vmem:[#allocation5 + $0x8] sm:$0xff]
    %v63 = vld [vmem:[#allocation5 + $0x10] sm:$0xff]
    %v64 = vld [vmem:[#allocation5 + $0x18] sm:$0xff]
    %v65 = vld [vmem:[#allocation5 + $0x20] sm:$0xff]
    %v66 = vld [vmem:[#allocation5 + $0x28] sm:$0xff]
    %v67 = vld [vmem:[#allocation5 + $0x30] sm:$0xff]
    %v68 = vld [vmem:[#allocation5 + $0x38] sm:$0xff]
    %v69 = vld [vmem:[#allocation5 + $0x40] sm:$0xff]
    %v70 = vld [vmem:[#allocation5 + $0x48] sm:$0xff]
    %v71 = vld [vmem:[#allocation5 + $0x50] sm:$0xff]
    %v72 = vld [vmem:[#allocation5 + $0x58] sm:$0xff]
    %v73 = vld [vmem:[#allocation5 + $0x60] sm:$0xff]
    %v74 = vld [vmem:[#allocation5 + $0x68] sm:$0xff]
    %v75 = vld [vmem:[#allocation5 + $0x70] sm:$0xff]
    %v76 = vld [vmem:[#allocation5 + $0x78] sm:$0xff]
    %v77 = vld [vmem:[#allocation5 + $0x80] sm:$0xff]
    %v78 = vld [vmem:[#allocation5 + $0x88] sm:$0xff]
    %v79 = vld [vmem:[#allocation5 + $0x90] sm:$0xff]
    %v80 = vld [vmem:[#allocation5 + $0x98] sm:$0xff]
    %v81 = vld [vmem:[#allocation5 + $0xa0] sm:$0xff]
    %v82 = vld [vmem:[#allocation5 + $0xa8] sm:$0xff]
    %v83 = vld [vmem:[#allocation5 + $0xb0] sm:$0xff]
    %v84 = vld [vmem:[#allocation5 + $0xb8] sm:$0xff]
    %v85 = vld [vmem:[#allocation5 + $0xc0] sm:$0xff]
    %v86 = vld [vmem:[#allocation5 + $0xc8] sm:$0xff]
    %v87 = vld [vmem:[#allocation5 + $0xd0] sm:$0xff]
    %v88 = vld [vmem:[#allocation5 + $0xd8] sm:$0xff]
    %v89 = vld [vmem:[#allocation5 + $0xe0] sm:$0xff]
    %v90 = vld [vmem:[#allocation5 + $0xe8] sm:$0xff]
    %v91 = vld [vmem:[#allocation5 + $0xf0] sm:$0xff]
    %v92 = vld [vmem:[#allocation5 + $0xf8] sm:$0xff]
    %v93 = vld [vmem:[#allocation5 + $0x100] sm:$0xff]
    %v94 = vld [vmem:[#allocation5 + $0x108] sm:$0xff]
    %v95 = vld [vmem:[#allocation5 + $0x110] sm:$0xff]
    %v96 = vld [vmem:[#allocation5 + $0x118] sm:$0xff]
    %v97 = vld [vmem:[#allocation5 + $0x120] sm:$0xff]
    %v98 = vld [vmem:[#allocation5 + $0x128] sm:$0xff]
    %v99 = vld [vmem:[#allocation5 + $0x130] sm:$0xff]
    %v100 = vld [vmem:[#allocation5 + $0x138] sm:$0xff]
    %v101 = vld [vmem:[#allocation5 + $0x140] sm:$0xff]
    %v102 = vld [vmem:[#allocation5 + $0x148] sm:$0xff]
    %v103 = vld [vmem:[#allocation5 + $0x150] sm:$0xff]
    %v104 = vld [vmem:[#allocation5 + $0x158] sm:$0xff]
    %v105 = vld [vmem:[#allocation5 + $0x160] sm:$0xff]
    %v106 = vld [vmem:[#allocation5 + $0x168] sm:$0xff]
    %v107 = vld [vmem:[#allocation5 + $0x170] sm:$0xff]
    %v108 = vld [vmem:[#allocation5 + $0x178] sm:$0xff]
    %v109 = vld [vmem:[#allocation5 + $0x180] sm:$0xff]
    %v110 = vld [vmem:[#allocation5 + $0x188] sm:$0xff]
    %v111 = vld [vmem:[#allocation5 + $0x190] sm:$0xff]
    %v112 = vld [vmem:[#allocation5 + $0x198] sm:$0xff]
    %v113 = vld [vmem:[#allocation5 + $0x1a0] sm:$0xff]
    %v114 = vld [vmem:[#allocation5 + $0x1a8] sm:$0xff]
    %v115 = vld [vmem:[#allocation5 + $0x1b0] sm:$0xff]
    %v116 = vld [vmem:[#allocation5 + $0x1b8] sm:$0xff]
    %v117 = vld [vmem:[#allocation5 + $0x1c0] sm:$0xff]
    %v118 = vld [vmem:[#allocation5 + $0x1c8] sm:$0xff]
    %v119 = vld [vmem:[#allocation5 + $0x1d0] sm:$0xff]
    %v120 = vld [vmem:[#allocation5 + $0x1d8] sm:$0xff]
    %v121 = vld [vmem:[#allocation5 + $0x1e0] sm:$0xff]
    %v122 = vld [vmem:[#allocation5 + $0x1e8] sm:$0xff]
    %v123 = vld [vmem:[#allocation5 + $0x1f0] sm:$0xff]
    %v124 = vld [vmem:[#allocation5 + $0x1f8] sm:$0xff]
    %v125 = vld [vmem:[#allocation5 + $0x200] sm:$0xff]
    %v126 = vld [vmem:[#allocation5 + $0x208] sm:$0xff]
    %v127 = vld [vmem:[#allocation5 + $0x210] sm:$0xff]
    %v128 = vld [vmem:[#allocation5 + $0x218] sm:$0xff]
    %v129 = vld [vmem:[#allocation5 + $0x220] sm:$0xff]
    %v130 = vld [vmem:[#allocation5 + $0x228] sm:$0xff]
    %v131 = vld [vmem:[#allocation5 + $0x230] sm:$0xff]
    %v132 = vld [vmem:[#allocation5 + $0x238] sm:$0xff]
    %v133 = vld [vmem:[#allocation5 + $0x240] sm:$0xff]
    %v134 = vld [vmem:[#allocation5 + $0x248] sm:$0xff]
    %v135 = vld [vmem:[#allocation5 + $0x250] sm:$0xff]
    %v136 = vld [vmem:[#allocation5 + $0x258] sm:$0xff]
    %v137 = vld [vmem:[#allocation5 + $0x260] sm:$0xff]
    %v138 = vld [vmem:[#allocation5 + $0x268] sm:$0xff]
    %v139 = vld [vmem:[#allocation5 + $0x270] sm:$0xff]
    %v140 = vld [vmem:[#allocation5 + $0x278] sm:$0xff]
    %v141 = vld [vmem:[#allocation5 + $0x280] sm:$0xff]
    %v142 = vld [vmem:[#allocation5 + $0x288] sm:$0xff]
    %v143 = vld [vmem:[#allocation5 + $0x290] sm:$0xff]
    %v144 = vld [vmem:[#allocation5 + $0x298] sm:$0xff]
    %v145 = vld [vmem:[#allocation5 + $0x2a0] sm:$0xff]
    %v146 = vld [vmem:[#allocation5 + $0x2a8] sm:$0xff]
    %v147 = vld [vmem:[#allocation5 + $0x2b0] sm:$0xff]
    %v148 = vld [vmem:[#allocation5 + $0x2b8] sm:$0xff]
    %v149 = vld [vmem:[#allocation5 + $0x2c0] sm:$0xff]
    %v150 = vld [vmem:[#allocation5 + $0x2c8] sm:$0xff]
    %v151 = vld [vmem:[#allocation5 + $0x2d0] sm:$0xff]
    %v152 = vld [vmem:[#allocation5 + $0x2d8] sm:$0xff]
    %v153 = vld [vmem:[#allocation5 + $0x2e0] sm:$0xff]
    %v154 = vld [vmem:[#allocation5 + $0x2e8] sm:$0xff]
    %v155 = vld [vmem:[#allocation5 + $0x2f0] sm:$0xff]
    %v156 = vld [vmem:[#allocation5 + $0x2f8] sm:$0xff]
    %v157 = vld [vmem:[#allocation5 + $0x300] sm:$0xff]
    %v158 = vld [vmem:[#allocation5 + $0x308] sm:$0xff]
    %v159 = vld [vmem:[#allocation5 + $0x310] sm:$0xff]
    %v160 = vld [vmem:[#allocation5 + $0x318] sm:$0xff]
    %v161 = vld [vmem:[#allocation5 + $0x320] sm:$0xff]
    %v162 = vld [vmem:[#allocation5 + $0x328] sm:$0xff]
    %v163 = vld [vmem:[#allocation5 + $0x330] sm:$0xff]
    %v164 = vld [vmem:[#allocation5 + $0x338] sm:$0xff]
    %v165 = vld [vmem:[#allocation5 + $0x340] sm:$0xff]
    %v166 = vld [vmem:[#allocation5 + $0x348] sm:$0xff]
    %v167 = vld [vmem:[#allocation5 + $0x350] sm:$0xff]
    %v168 = vld [vmem:[#allocation5 + $0x358] sm:$0xff]
    %v169 = vld [vmem:[#allocation7] sm:$0xff]
    %v170 = vld [vmem:[#allocation7 + $0x8] sm:$0xff]
    %v171 = vld [vmem:[#allocation7 + $0x10] sm:$0x3]
    %v280 = vunpack.c.l.b16 %v61
    %v281 = vunpack.c.h.b16 %v61
    %v282 = vunpack.c.l.b16 %v62
    %v283 = vunpack.c.h.b16 %v62
    %v284 = vunpack.c.l.b16 %v63
    %v285 = vunpack.c.h.b16 %v63
    %v286 = vunpack.c.l.b16 %v64
    %v287 = vunpack.c.h.b16 %v64
    %v288 = vunpack.c.l.b16 %v65
    %v289 = vunpack.c.h.b16 %v65
    %v290 = vunpack.c.l.b16 %v66
    %v291 = vunpack.c.h.b16 %v66
    %v292 = vunpack.c.l.b16 %v67
    %v293 = vunpack.c.h.b16 %v67
    %v294 = vunpack.c.l.b16 %v68
    %v295 = vunpack.c.h.b16 %v68
    %v296 = vunpack.c.l.b16 %v69
    %v297 = vunpack.c.h.b16 %v69
    %v298 = vunpack.c.l.b16 %v70
    %v299 = vunpack.c.h.b16 %v70
    %v300 = vunpack.c.l.b16 %v71
    %v301 = vunpack.c.h.b16 %v71
    %v302 = vunpack.c.l.b16 %v72
    %v303 = vunpack.c.h.b16 %v72
    %v304 = vunpack.c.l.b16 %v73
    %v305 = vunpack.c.h.b16 %v73
    %v306 = vunpack.c.l.b16 %v74
    %v307 = vunpack.c.h.b16 %v74
    %v308 = vunpack.c.l.b16 %v75
    %v309 = vunpack.c.h.b16 %v75
    %v310 = vunpack.c.l.b16 %v76
    %v311 = vunpack.c.h.b16 %v76
    %v312 = vunpack.c.l.b16 %v77
    %v313 = vunpack.c.h.b16 %v77
    %v314 = vunpack.c.l.b16 %v78
    %v315 = vunpack.c.h.b16 %v78
    %v316 = vunpack.c.l.b16 %v79
    %v317 = vunpack.c.h.b16 %v79
    %v318 = vunpack.c.l.b16 %v80
    %v319 = vunpack.c.h.b16 %v80
    %v320 = vunpack.c.l.b16 %v81
    %v321 = vunpack.c.h.b16 %v81
    %v322 = vunpack.c.l.b16 %v82
    %v323 = vunpack.c.h.b16 %v82
    %v324 = vunpack.c.l.b16 %v83
    %v325 = vunpack.c.h.b16 %v83
    %v326 = vunpack.c.l.b16 %v84
    %v327 = vunpack.c.h.b16 %v84
    %v328 = vunpack.c.l.b16 %v85
    %v329 = vunpack.c.h.b16 %v85
    %v330 = vunpack.c.l.b16 %v86
    %v331 = vunpack.c.h.b16 %v86
    %v332 = vunpack.c.l.b16 %v87
    %v333 = vunpack.c.h.b16 %v87
    %v334 = vunpack.c.l.b16 %v88
    %v335 = vunpack.c.h.b16 %v88
    %v336 = vunpack.c.l.b16 %v89
    %v337 = vunpack.c.h.b16 %v89
    %v338 = vunpack.c.l.b16 %v90
    %v339 = vunpack.c.h.b16 %v90
    %v340 = vunpack.c.l.b16 %v91
    %v341 = vunpack.c.h.b16 %v91
    %v342 = vunpack.c.l.b16 %v92
    %v343 = vunpack.c.h.b16 %v92
    %v344 = vunpack.c.l.b16 %v93
    %v345 = vunpack.c.h.b16 %v93
    %v346 = vunpack.c.l.b16 %v94
    %v347 = vunpack.c.h.b16 %v94
    %v348 = vunpack.c.l.b16 %v95
    %v349 = vunpack.c.h.b16 %v95
    %v350 = vunpack.c.l.b16 %v96
    %v351 = vunpack.c.h.b16 %v96
    %v352 = vunpack.c.l.b16 %v97
    %v353 = vunpack.c.h.b16 %v97
    %v354 = vunpack.c.l.b16 %v98
    %v355 = vunpack.c.h.b16 %v98
    %v356 = vunpack.c.l.b16 %v99
    %v357 = vunpack.c.h.b16 %v99
    %v358 = vunpack.c.l.b16 %v100
    %v359 = vunpack.c.h.b16 %v100
    %v360 = vunpack.c.l.b16 %v101
    %v361 = vunpack.c.h.b16 %v101
    %v362 = vunpack.c.l.b16 %v102
    %v363 = vunpack.c.h.b16 %v102
    %v364 = vunpack.c.l.b16 %v103
    %v365 = vunpack.c.h.b16 %v103
    %v366 = vunpack.c.l.b16 %v104
    %v367 = vunpack.c.h.b16 %v104
    %v368 = vunpack.c.l.b16 %v105
    %v369 = vunpack.c.h.b16 %v105
    %v370 = vunpack.c.l.b16 %v106
    %v371 = vunpack.c.h.b16 %v106
    %v372 = vunpack.c.l.b16 %v107
    %v373 = vunpack.c.h.b16 %v107
    %v374 = vunpack.c.l.b16 %v108
    %v375 = vunpack.c.h.b16 %v108
    %v376 = vunpack.c.l.b16 %v109
    %v377 = vunpack.c.h.b16 %v109
    %v378 = vunpack.c.l.b16 %v110
    %v379 = vunpack.c.h.b16 %v110
    %v380 = vunpack.c.l.b16 %v111
    %v381 = vunpack.c.h.b16 %v111
    %v382 = vunpack.c.l.b16 %v112
    %v383 = vunpack.c.h.b16 %v112
    %v384 = vunpack.c.l.b16 %v113
    %v385 = vunpack.c.h.b16 %v113
    %v386 = vunpack.c.l.b16 %v114
    %v387 = vunpack.c.h.b16 %v114
    %v388 = vunpack.c.l.b16 %v115
    %v389 = vunpack.c.h.b16 %v115
    %v390 = vunpack.c.l.b16 %v116
    %v391 = vunpack.c.h.b16 %v116
    %v392 = vunpack.c.l.b16 %v117
    %v393 = vunpack.c.h.b16 %v117
    %v394 = vunpack.c.l.b16 %v118
    %v395 = vunpack.c.h.b16 %v118
    %v396 = vunpack.c.l.b16 %v119
    %v397 = vunpack.c.h.b16 %v119
    %v398 = vunpack.c.l.b16 %v120
    %v399 = vunpack.c.h.b16 %v120
    %v400 = vunpack.c.l.b16 %v121
    %v401 = vunpack.c.h.b16 %v121
    %v402 = vunpack.c.l.b16 %v122
    %v403 = vunpack.c.h.b16 %v122
    %v404 = vunpack.c.l.b16 %v123
    %v405 = vunpack.c.h.b16 %v123
    %v406 = vunpack.c.l.b16 %v124
    %v407 = vunpack.c.h.b16 %v124
    %v408 = vunpack.c.l.b16 %v125
    %v409 = vunpack.c.h.b16 %v125
    %v410 = vunpack.c.l.b16 %v126
    %v411 = vunpack.c.h.b16 %v126
    %v412 = vunpack.c.l.b16 %v127
    %v413 = vunpack.c.h.b16 %v127
    %v414 = vunpack.c.l.b16 %v128
    %v415 = vunpack.c.h.b16 %v128
    %v416 = vunpack.c.l.b16 %v129
    %v417 = vunpack.c.h.b16 %v129
    %v418 = vunpack.c.l.b16 %v130
    %v419 = vunpack.c.h.b16 %v130
    %v420 = vunpack.c.l.b16 %v131
    %v421 = vunpack.c.h.b16 %v131
    %v422 = vunpack.c.l.b16 %v132
    %v423 = vunpack.c.h.b16 %v132
    %v424 = vunpack.c.l.b16 %v133
    %v425 = vunpack.c.h.b16 %v133
    %v426 = vunpack.c.l.b16 %v134
    %v427 = vunpack.c.h.b16 %v134
    %v428 = vunpack.c.l.b16 %v135
    %v429 = vunpack.c.h.b16 %v135
    %v430 = vunpack.c.l.b16 %v136
    %v431 = vunpack.c.h.b16 %v136
    %v432 = vunpack.c.l.b16 %v137
    %v433 = vunpack.c.h.b16 %v137
    %v434 = vunpack.c.l.b16 %v138
    %v435 = vunpack.c.h.b16 %v138
    %v436 = vunpack.c.l.b16 %v139
    %v437 = vunpack.c.h.b16 %v139
    %v438 = vunpack.c.l.b16 %v140
    %v439 = vunpack.c.h.b16 %v140
    %v440 = vunpack.c.l.b16 %v141
    %v441 = vunpack.c.h.b16 %v141
    %v442 = vunpack.c.l.b16 %v142
    %v443 = vunpack.c.h.b16 %v142
    %v444 = vunpack.c.l.b16 %v143
    %v445 = vunpack.c.h.b16 %v143
    %v446 = vunpack.c.l.b16 %v144
    %v447 = vunpack.c.h.b16 %v144
    %v448 = vunpack.c.l.b16 %v145
    %v449 = vunpack.c.h.b16 %v145
    %v450 = vunpack.c.l.b16 %v146
    %v451 = vunpack.c.h.b16 %v146
    %v452 = vunpack.c.l.b16 %v147
    %v453 = vunpack.c.h.b16 %v147
    %v454 = vunpack.c.l.b16 %v148
    %v455 = vunpack.c.h.b16 %v148
    %v456 = vunpack.c.l.b16 %v149
    %v457 = vunpack.c.h.b16 %v149
    %v458 = vunpack.c.l.b16 %v150
    %v459 = vunpack.c.h.b16 %v150
    %v460 = vunpack.c.l.b16 %v151
    %v461 = vunpack.c.h.b16 %v151
    %v462 = vunpack.c.l.b16 %v152
    %v463 = vunpack.c.h.b16 %v152
    %v464 = vunpack.c.l.b16 %v153
    %v465 = vunpack.c.h.b16 %v153
    %v466 = vunpack.c.l.b16 %v154
    %v467 = vunpack.c.h.b16 %v154
    %v468 = vunpack.c.l.b16 %v155
    %v469 = vunpack.c.h.b16 %v155
    %v470 = vunpack.c.l.b16 %v156
    %v471 = vunpack.c.h.b16 %v156
    %v472 = vunpack.c.l.b16 %v157
    %v473 = vunpack.c.h.b16 %v157
    %v474 = vunpack.c.l.b16 %v158
    %v475 = vunpack.c.h.b16 %v158
    %v476 = vunpack.c.l.b16 %v159
    %v477 = vunpack.c.h.b16 %v159
    %v478 = vunpack.c.l.b16 %v160
    %v479 = vunpack.c.h.b16 %v160
    %v480 = vunpack.c.l.b16 %v161
    %v481 = vunpack.c.h.b16 %v161
    %v482 = vunpack.c.l.b16 %v162
    %v483 = vunpack.c.h.b16 %v162
    %v484 = vunpack.c.l.b16 %v163
    %v485 = vunpack.c.h.b16 %v163
    %v486 = vunpack.c.l.b16 %v164
    %v487 = vunpack.c.h.b16 %v164
    %v488 = vunpack.c.l.b16 %v165
    %v489 = vunpack.c.h.b16 %v165
    %v490 = vunpack.c.l.b16 %v166
    %v491 = vunpack.c.h.b16 %v166
    %v492 = vunpack.c.l.b16 %v167
    %v493 = vunpack.c.h.b16 %v167
    %v494 = vunpack.c.l.b16 %v168
    %v495 = vunpack.c.h.b16 %v168
    %v496 = vpack.c.b16 %v298, %v280
    %v497 = vpack.c.b16 %v299, %v281
    %v498 = vpack.c.b16 %v300, %v282
    %v499 = vpack.c.b16 %v301, %v283
    %v500 = vpack.c.b16 %v302, %v284
    %v501 = vpack.c.b16 %v303, %v285
    %v502 = vpack.c.b16 %v304, %v286
    %v503 = vpack.c.b16 %v305, %v287
    %v504 = vpack.c.b16 %v306, %v288
    %v505 = vpack.c.b16 %v307, %v289
    %v506 = vpack.c.b16 %v308, %v290
    %v507 = vpack.c.b16 %v309, %v291
    %v508 = vpack.c.b16 %v310, %v292
    %v509 = vpack.c.b16 %v311, %v293
    %v510 = vpack.c.b16 %v312, %v294
    %v511 = vpack.c.b16 %v313, %v295
    %v512 = vpack.c.b16 %v314, %v296
    %v513 = vpack.c.b16 %v315, %v297
    %v514 = vpack.c.b16 %v334, %v316
    %v515 = vpack.c.b16 %v335, %v317
    %v516 = vpack.c.b16 %v336, %v318
    %v517 = vpack.c.b16 %v337, %v319
    %v518 = vpack.c.b16 %v338, %v320
    %v519 = vpack.c.b16 %v339, %v321
    %v520 = vpack.c.b16 %v340, %v322
    %v521 = vpack.c.b16 %v341, %v323
    %v522 = vpack.c.b16 %v342, %v324
    %v523 = vpack.c.b16 %v343, %v325
    %v524 = vpack.c.b16 %v344, %v326
    %v525 = vpack.c.b16 %v345, %v327
    %v526 = vpack.c.b16 %v346, %v328
    %v527 = vpack.c.b16 %v347, %v329
    %v528 = vpack.c.b16 %v348, %v330
    %v529 = vpack.c.b16 %v349, %v331
    %v530 = vpack.c.b16 %v350, %v332
    %v531 = vpack.c.b16 %v351, %v333
    %v532 = vpack.c.b16 %v370, %v352
    %v533 = vpack.c.b16 %v371, %v353
    %v534 = vpack.c.b16 %v372, %v354
    %v535 = vpack.c.b16 %v373, %v355
    %v536 = vpack.c.b16 %v374, %v356
    %v537 = vpack.c.b16 %v375, %v357
    %v538 = vpack.c.b16 %v376, %v358
    %v539 = vpack.c.b16 %v377, %v359
    %v540 = vpack.c.b16 %v378, %v360
    %v541 = vpack.c.b16 %v379, %v361
    %v542 = vpack.c.b16 %v380, %v362
    %v543 = vpack.c.b16 %v381, %v363
    %v544 = vpack.c.b16 %v382, %v364
    %v545 = vpack.c.b16 %v383, %v365
    %v546 = vpack.c.b16 %v384, %v366
    %v547 = vpack.c.b16 %v385, %v367
    %v548 = vpack.c.b16 %v386, %v368
    %v549 = vpack.c.b16 %v387, %v369
    %v550 = vpack.c.b16 %v406, %v388
    %v551 = vpack.c.b16 %v407, %v389
    %v552 = vpack.c.b16 %v408, %v390
    %v553 = vpack.c.b16 %v409, %v391
    %v554 = vpack.c.b16 %v410, %v392
    %v555 = vpack.c.b16 %v411, %v393
    %v556 = vpack.c.b16 %v412, %v394
    %v557 = vpack.c.b16 %v413, %v395
    %v558 = vpack.c.b16 %v414, %v396
    %v559 = vpack.c.b16 %v415, %v397
    %v560 = vpack.c.b16 %v416, %v398
    %v561 = vpack.c.b16 %v417, %v399
    %v562 = vpack.c.b16 %v418, %v400
    %v563 = vpack.c.b16 %v419, %v401
    %v564 = vpack.c.b16 %v420, %v402
    %v565 = vpack.c.b16 %v421, %v403
    %v566 = vpack.c.b16 %v422, %v404
    %v567 = vpack.c.b16 %v423, %v405
    %v568 = vpack.c.b16 %v442, %v424
    %v569 = vpack.c.b16 %v443, %v425
    %v570 = vpack.c.b16 %v444, %v426
    %v571 = vpack.c.b16 %v445, %v427
    %v572 = vpack.c.b16 %v446, %v428
    %v573 = vpack.c.b16 %v447, %v429
    %v574 = vpack.c.b16 %v448, %v430
    %v575 = vpack.c.b16 %v449, %v431
    %v576 = vpack.c.b16 %v450, %v432
    %v577 = vpack.c.b16 %v451, %v433
    %v578 = vpack.c.b16 %v452, %v434
    %v579 = vpack.c.b16 %v453, %v435
    %v580 = vpack.c.b16 %v454, %v436
    %v581 = vpack.c.b16 %v455, %v437
    %v582 = vpack.c.b16 %v456, %v438
    %v583 = vpack.c.b16 %v457, %v439
    %v584 = vpack.c.b16 %v458, %v440
    %v585 = vpack.c.b16 %v459, %v441
    %v586 = vpack.c.b16 %v478, %v460
    %v587 = vpack.c.b16 %v479, %v461
    %v588 = vpack.c.b16 %v480, %v462
    %v589 = vpack.c.b16 %v481, %v463
    %v590 = vpack.c.b16 %v482, %v464
    %v591 = vpack.c.b16 %v483, %v465
    %v592 = vpack.c.b16 %v484, %v466
    %v593 = vpack.c.b16 %v485, %v467
    %v594 = vpack.c.b16 %v486, %v468
    %v595 = vpack.c.b16 %v487, %v469
    %v596 = vpack.c.b16 %v488, %v470
    %v597 = vpack.c.b16 %v489, %v471
    %v598 = vpack.c.b16 %v490, %v472
    %v599 = vpack.c.b16 %v491, %v473
    %v600 = vpack.c.b16 %v492, %v474
    %v601 = vpack.c.b16 %v493, %v475
    %v602 = vpack.c.b16 %v494, %v476
    %v603 = vpack.c.b16 %v495, %v477
    %v715 = vperm.slane %v169, 0
    %v716 = vperm.slane %v169, 1
    %v717 = vperm.slane %v169, 2
    %v718 = vperm.slane %v169, 3
    %v719 = vperm.slane %v169, 4
    %v720 = vperm.slane %v169, 5
    %v721 = vperm.slane %v169, 6
    %v722 = vperm.slane %v169, 7
    %v723 = vperm.slane %v170, 0
    %v724 = vperm.slane %v170, 1
    %v725 = vperm.slane %v170, 2
    %v726 = vperm.slane %v170, 3
    %v727 = vperm.slane %v170, 4
    %v728 = vperm.slane %v170, 5
    %v729 = vperm.slane %v170, 6
    %v730 = vperm.slane %v170, 7
    %v731 = vperm.slane %v171, 0
    %v732 = vperm.slane %v171, 1
    %vm751 = vcmask 785408
    %v753 = vsel %vm751, %v60, 0
    %755 = vmatpush.bf16.msra.mxu0 0
    %756 = vmatpush.bf16.msra.mxu0 0
    %757 = vmatpush.bf16.msra.mxu0 %v586
    %758 = vmatpush.bf16.msra.mxu0 %v568
    %759 = vmatpush.bf16.msra.mxu0 %v550
    %760 = vmatpush.bf16.msra.mxu0 %v532
    %761 = vmatpush.bf16.msra.mxu0 %v514
    %762 = vmatpush.bf16.msra.mxu0 %v496
    %763 = vmatmul.bf16.gmra.mxu0 %v753
    %v764 = vpop.f32.mrf.mxu0
    %v765 = vadd.f32 %v715, %v764
    %v766 = vpop.f32.mrf.mxu0
    %767 = vdwg.mxu0
    %768 = vmatpush.bf16.msra.mxu0 0
    %769 = vmatpush.bf16.msra.mxu0 0
    %770 = vmatpush.bf16.msra.mxu0 %v587
    %771 = vmatpush.bf16.msra.mxu0 %v569
    %772 = vmatpush.bf16.msra.mxu0 %v551
    %773 = vmatpush.bf16.msra.mxu0 %v533
    %774 = vmatpush.bf16.msra.mxu0 %v515
    %775 = vmatpush.bf16.msra.mxu0 %v497
    %776 = vmatmul.bf16.gmra.mxu0 %v753
    %v777 = vpop.f32.mrf.mxu0
    %v778 = vadd.f32 %v716, %v777
    %v779 = vpop.f32.mrf.mxu0
    %780 = vdwg.mxu0
    %781 = vmatpush.bf16.msra.mxu0 0
    %782 = vmatpush.bf16.msra.mxu0 0
    %783 = vmatpush.bf16.msra.mxu0 %v588
    %784 = vmatpush.bf16.msra.mxu0 %v570
    %785 = vmatpush.bf16.msra.mxu0 %v552
    %786 = vmatpush.bf16.msra.mxu0 %v534
    %787 = vmatpush.bf16.msra.mxu0 %v516
    %788 = vmatpush.bf16.msra.mxu0 %v498
    %789 = vmatmul.bf16.gmra.mxu0 %v753
    %v790 = vpop.f32.mrf.mxu0
    %v791 = vadd.f32 %v717, %v790
    %v792 = vpop.f32.mrf.mxu0
    %793 = vdwg.mxu0
    %794 = vmatpush.bf16.msra.mxu0 0
    %795 = vmatpush.bf16.msra.mxu0 0
    %796 = vmatpush.bf16.msra.mxu0 %v589
    %797 = vmatpush.bf16.msra.mxu0 %v571
    %798 = vmatpush.bf16.msra.mxu0 %v553
    %799 = vmatpush.bf16.msra.mxu0 %v535
    %800 = vmatpush.bf16.msra.mxu0 %v517
    %801 = vmatpush.bf16.msra.mxu0 %v499
    %802 = vmatmul.bf16.gmra.mxu0 %v753
    %v803 = vpop.f32.mrf.mxu0
    %v804 = vadd.f32 %v718, %v803
    %v805 = vpop.f32.mrf.mxu0
    %806 = vdwg.mxu0
    %807 = vmatpush.bf16.msra.mxu0 0
    %808 = vmatpush.bf16.msra.mxu0 0
    %809 = vmatpush.bf16.msra.mxu0 %v590
    %810 = vmatpush.bf16.msra.mxu0 %v572
    %811 = vmatpush.bf16.msra.mxu0 %v554
    %812 = vmatpush.bf16.msra.mxu0 %v536
    %813 = vmatpush.bf16.msra.mxu0 %v518
    %814 = vmatpush.bf16.msra.mxu0 %v500
    %815 = vmatmul.bf16.gmra.mxu0 %v753
    %v816 = vpop.f32.mrf.mxu0
    %v817 = vadd.f32 %v719, %v816
    %v818 = vpop.f32.mrf.mxu0
    %819 = vdwg.mxu0
    %820 = vmatpush.bf16.msra.mxu0 0
    %821 = vmatpush.bf16.msra.mxu0 0
    %822 = vmatpush.bf16.msra.mxu0 %v591
    %823 = vmatpush.bf16.msra.mxu0 %v573
    %824 = vmatpush.bf16.msra.mxu0 %v555
    %825 = vmatpush.bf16.msra.mxu0 %v537
    %826 = vmatpush.bf16.msra.mxu0 %v519
    %827 = vmatpush.bf16.msra.mxu0 %v501
    %828 = vmatmul.bf16.gmra.mxu0 %v753
    %v829 = vpop.f32.mrf.mxu0
    %v830 = vadd.f32 %v720, %v829
    %v831 = vpop.f32.mrf.mxu0
    %832 = vdwg.mxu0
    %833 = vmatpush.bf16.msra.mxu0 0
    %834 = vmatpush.bf16.msra.mxu0 0
    %835 = vmatpush.bf16.msra.mxu0 %v592
    %836 = vmatpush.bf16.msra.mxu0 %v574
    %837 = vmatpush.bf16.msra.mxu0 %v556
    %838 = vmatpush.bf16.msra.mxu0 %v538
    %839 = vmatpush.bf16.msra.mxu0 %v520
    %840 = vmatpush.bf16.msra.mxu0 %v502
    %841 = vmatmul.bf16.gmra.mxu0 %v753
    %v842 = vpop.f32.mrf.mxu0
    %v843 = vadd.f32 %v721, %v842
    %v844 = vpop.f32.mrf.mxu0
    %845 = vdwg.mxu0
    %846 = vmatpush.bf16.msra.mxu0 0
    %847 = vmatpush.bf16.msra.mxu0 0
    %848 = vmatpush.bf16.msra.mxu0 %v593
    %849 = vmatpush.bf16.msra.mxu0 %v575
    %850 = vmatpush.bf16.msra.mxu0 %v557
    %851 = vmatpush.bf16.msra.mxu0 %v539
    %852 = vmatpush.bf16.msra.mxu0 %v521
    %853 = vmatpush.bf16.msra.mxu0 %v503
    %854 = vmatmul.bf16.gmra.mxu0 %v753
    %v855 = vpop.f32.mrf.mxu0
    %v856 = vadd.f32 %v722, %v855
    %v857 = vpop.f32.mrf.mxu0
    %858 = vdwg.mxu0
    %859 = vmatpush.bf16.msra.mxu0 0
    %860 = vmatpush.bf16.msra.mxu0 0
    %861 = vmatpush.bf16.msra.mxu0 %v594
    %862 = vmatpush.bf16.msra.mxu0 %v576
    %863 = vmatpush.bf16.msra.mxu0 %v558
    %864 = vmatpush.bf16.msra.mxu0 %v540
    %865 = vmatpush.bf16.msra.mxu0 %v522
    %866 = vmatpush.bf16.msra.mxu0 %v504
    %867 = vmatmul.bf16.gmra.mxu0 %v753
    %v868 = vpop.f32.mrf.mxu0
    %v869 = vadd.f32 %v723, %v868
    %v870 = vpop.f32.mrf.mxu0
    %871 = vdwg.mxu0
    %872 = vmatpush.bf16.msra.mxu0 0
    %873 = vmatpush.bf16.msra.mxu0 0
    %874 = vmatpush.bf16.msra.mxu0 %v595
    %875 = vmatpush.bf16.msra.mxu0 %v577
    %876 = vmatpush.bf16.msra.mxu0 %v559
    %877 = vmatpush.bf16.msra.mxu0 %v541
    %878 = vmatpush.bf16.msra.mxu0 %v523
    %879 = vmatpush.bf16.msra.mxu0 %v505
    %880 = vmatmul.bf16.gmra.mxu0 %v753
    %v881 = vpop.f32.mrf.mxu0
    %v882 = vadd.f32 %v724, %v881
    %v883 = vpop.f32.mrf.mxu0
    %884 = vdwg.mxu0
    %885 = vmatpush.bf16.msra.mxu0 0
    %886 = vmatpush.bf16.msra.mxu0 0
    %887 = vmatpush.bf16.msra.mxu0 %v596
    %888 = vmatpush.bf16.msra.mxu0 %v578
    %889 = vmatpush.bf16.msra.mxu0 %v560
    %890 = vmatpush.bf16.msra.mxu0 %v542
    %891 = vmatpush.bf16.msra.mxu0 %v524
    %892 = vmatpush.bf16.msra.mxu0 %v506
    %893 = vmatmul.bf16.gmra.mxu0 %v753
    %v894 = vpop.f32.mrf.mxu0
    %v895 = vadd.f32 %v725, %v894
    %v896 = vpop.f32.mrf.mxu0
    %897 = vdwg.mxu0
    %898 = vmatpush.bf16.msra.mxu0 0
    %899 = vmatpush.bf16.msra.mxu0 0
    %900 = vmatpush.bf16.msra.mxu0 %v597
    %901 = vmatpush.bf16.msra.mxu0 %v579
    %902 = vmatpush.bf16.msra.mxu0 %v561
    %903 = vmatpush.bf16.msra.mxu0 %v543
    %904 = vmatpush.bf16.msra.mxu0 %v525
    %905 = vmatpush.bf16.msra.mxu0 %v507
    %906 = vmatmul.bf16.gmra.mxu0 %v753
    %v907 = vpop.f32.mrf.mxu0
    %v908 = vadd.f32 %v726, %v907
    %v909 = vpop.f32.mrf.mxu0
    %910 = vdwg.mxu0
    %911 = vmatpush.bf16.msra.mxu0 0
    %912 = vmatpush.bf16.msra.mxu0 0
    %913 = vmatpush.bf16.msra.mxu0 %v598
    %914 = vmatpush.bf16.msra.mxu0 %v580
    %915 = vmatpush.bf16.msra.mxu0 %v562
    %916 = vmatpush.bf16.msra.mxu0 %v544
    %917 = vmatpush.bf16.msra.mxu0 %v526
    %918 = vmatpush.bf16.msra.mxu0 %v508
    %919 = vmatmul.bf16.gmra.mxu0 %v753
    %v920 = vpop.f32.mrf.mxu0
    %v921 = vadd.f32 %v727, %v920
    %v922 = vpop.f32.mrf.mxu0
    %923 = vdwg.mxu0
    %924 = vmatpush.bf16.msra.mxu0 0
    %925 = vmatpush.bf16.msra.mxu0 0
    %926 = vmatpush.bf16.msra.mxu0 %v599
    %927 = vmatpush.bf16.msra.mxu0 %v581
    %928 = vmatpush.bf16.msra.mxu0 %v563
    %929 = vmatpush.bf16.msra.mxu0 %v545
    %930 = vmatpush.bf16.msra.mxu0 %v527
    %931 = vmatpush.bf16.msra.mxu0 %v509
    %932 = vmatmul.bf16.gmra.mxu0 %v753
    %v933 = vpop.f32.mrf.mxu0
    %v934 = vadd.f32 %v728, %v933
    %v935 = vpop.f32.mrf.mxu0
    %936 = vdwg.mxu0
    %937 = vmatpush.bf16.msra.mxu0 0
    %938 = vmatpush.bf16.msra.mxu0 0
    %939 = vmatpush.bf16.msra.mxu0 %v600
    %940 = vmatpush.bf16.msra.mxu0 %v582
    %941 = vmatpush.bf16.msra.mxu0 %v564
    %942 = vmatpush.bf16.msra.mxu0 %v546
    %943 = vmatpush.bf16.msra.mxu0 %v528
    %944 = vmatpush.bf16.msra.mxu0 %v510
    %945 = vmatmul.bf16.gmra.mxu0 %v753
    %v946 = vpop.f32.mrf.mxu0
    %v947 = vadd.f32 %v729, %v946
    %v948 = vpop.f32.mrf.mxu0
    %949 = vdwg.mxu0
    %950 = vmatpush.bf16.msra.mxu0 0
    %951 = vmatpush.bf16.msra.mxu0 0
    %952 = vmatpush.bf16.msra.mxu0 %v601
    %953 = vmatpush.bf16.msra.mxu0 %v583
    %954 = vmatpush.bf16.msra.mxu0 %v565
    %955 = vmatpush.bf16.msra.mxu0 %v547
    %956 = vmatpush.bf16.msra.mxu0 %v529
    %957 = vmatpush.bf16.msra.mxu0 %v511
    %958 = vmatmul.bf16.gmra.mxu0 %v753
    %v959 = vpop.f32.mrf.mxu0
    %v960 = vadd.f32 %v730, %v959
    %v961 = vpop.f32.mrf.mxu0
    %962 = vdwg.mxu0
    %963 = vmatpush.bf16.msra.mxu0 0
    %964 = vmatpush.bf16.msra.mxu0 0
    %965 = vmatpush.bf16.msra.mxu0 %v602
    %966 = vmatpush.bf16.msra.mxu0 %v584
    %967 = vmatpush.bf16.msra.mxu0 %v566
    %968 = vmatpush.bf16.msra.mxu0 %v548
    %969 = vmatpush.bf16.msra.mxu0 %v530
    %970 = vmatpush.bf16.msra.mxu0 %v512
    %971 = vmatmul.bf16.gmra.mxu0 %v753
    %v972 = vpop.f32.mrf.mxu0
    %v973 = vadd.f32 %v731, %v972
    %v974 = vpop.f32.mrf.mxu0
    %975 = vdwg.mxu0
    %976 = vmatpush.bf16.msra.mxu0 0
    %977 = vmatpush.bf16.msra.mxu0 0
    %978 = vmatpush.bf16.msra.mxu0 %v603
    %979 = vmatpush.bf16.msra.mxu0 %v585
    %980 = vmatpush.bf16.msra.mxu0 %v567
    %981 = vmatpush.bf16.msra.mxu0 %v549
    %982 = vmatpush.bf16.msra.mxu0 %v531
    %983 = vmatpush.bf16.msra.mxu0 %v513
    %984 = vmatmul.bf16.gmra.mxu0 %v753
    %v985 = vpop.f32.mrf.mxu0
    %v986 = vadd.f32 %v732, %v985
    %v987 = vpop.f32.mrf.mxu0
    %988 = vdwg.mxu0
    %v989 = vxor.u32 %v765, 2147483648
    %v990 = vxor.u32 %v778, 2147483648
    %v991 = vxor.u32 %v791, 2147483648
    %v992 = vxor.u32 %v804, 2147483648
    %v993 = vxor.u32 %v817, 2147483648
    %v994 = vxor.u32 %v830, 2147483648
    %v995 = vxor.u32 %v843, 2147483648
    %v996 = vxor.u32 %v856, 2147483648
    %v997 = vxor.u32 %v869, 2147483648
    %v998 = vxor.u32 %v882, 2147483648
    %v999 = vxor.u32 %v895, 2147483648
    %v1000 = vxor.u32 %v908, 2147483648
    %v1001 = vxor.u32 %v921, 2147483648
    %v1002 = vxor.u32 %v934, 2147483648
    %v1003 = vxor.u32 %v947, 2147483648
    %v1004 = vxor.u32 %v960, 2147483648
    %v1005 = vxor.u32 %v973, 2147483648
    %v1006 = vxor.u32 %v986, 2147483648
    %v1007 = vmul.f32 %v989, 1.442695
    %v1008 = vpow.pop %v1007
    %v1009 = vmul.f32 %v990, 1.442695
    %v1010 = vpow.pop %v1009
    %v1011 = vmul.f32 %v991, 1.442695
    %v1012 = vpow.pop %v1011
    %v1013 = vmul.f32 %v992, 1.442695
    %v1014 = vpow.pop %v1013
    %v1015 = vmul.f32 %v993, 1.442695
    %v1016 = vpow.pop %v1015
    %v1017 = vmul.f32 %v994, 1.442695
    %v1018 = vpow.pop %v1017
    %v1019 = vmul.f32 %v995, 1.442695
    %v1020 = vpow.pop %v1019
    %v1021 = vmul.f32 %v996, 1.442695
    %v1022 = vpow.pop %v1021
    %v1023 = vmul.f32 %v997, 1.442695
    %v1024 = vpow.pop %v1023
    %v1025 = vmul.f32 %v998, 1.442695
    %v1026 = vpow.pop %v1025
    %v1027 = vmul.f32 %v999, 1.442695
    %v1028 = vpow.pop %v1027
    %v1029 = vmul.f32 %v1000, 1.442695
    %v1030 = vpow.pop %v1029
    %v1031 = vmul.f32 %v1001, 1.442695
    %v1032 = vpow.pop %v1031
    %v1033 = vmul.f32 %v1002, 1.442695
    %v1034 = vpow.pop %v1033
    %v1035 = vmul.f32 %v1003, 1.442695
    %v1036 = vpow.pop %v1035
    %v1037 = vmul.f32 %v1004, 1.442695
    %v1038 = vpow.pop %v1037
    %v1039 = vmul.f32 %v1005, 1.442695
    %v1040 = vpow.pop %v1039
    %v1041 = vmul.f32 %v1006, 1.442695
    %v1042 = vpow.pop %v1041
    %v1043 = vadd.f32 %v1008, 1.0
    %v1044 = vadd.f32 %v1010, 1.0
    %v1045 = vadd.f32 %v1012, 1.0
    %v1046 = vadd.f32 %v1014, 1.0
    %v1047 = vadd.f32 %v1016, 1.0
    %v1048 = vadd.f32 %v1018, 1.0
    %v1049 = vadd.f32 %v1020, 1.0
    %v1050 = vadd.f32 %v1022, 1.0
    %v1051 = vadd.f32 %v1024, 1.0
    %v1052 = vadd.f32 %v1026, 1.0
    %v1053 = vadd.f32 %v1028, 1.0
    %v1054 = vadd.f32 %v1030, 1.0
    %v1055 = vadd.f32 %v1032, 1.0
    %v1056 = vadd.f32 %v1034, 1.0
    %v1057 = vadd.f32 %v1036, 1.0
    %v1058 = vadd.f32 %v1038, 1.0
    %v1059 = vadd.f32 %v1040, 1.0
    %v1060 = vadd.f32 %v1042, 1.0
    %v1061 = vrcp.pop %v1043
    %v1062 = vmul.f32 %v1043, %v1061
    %v1063 = vsub.f32 1.0, %v1062
    %v1064 = vmul.f32 %v1061, %v1063
    %v1065 = vadd.f32 %v1061, %v1064
    %vm1066 = vweird.f32 %v1043
    %vm1067 = vweird.f32 %v1061
    %vm1068 = vmor %vm1066, %vm1067
    %v1069 = vsel %vm1068, %v1061, %v1065
    %v1070 = vand.u32 2147483647, %v1043
    %vm1071 = vcmp.eq.f32.partialorder %v1070, 8.507059e+37
    %v1072 = vand.u32 %v1043, 2147483648
    %v1073 = vor.u32 1.1754944e-38, %v1072
    %v1074 = vsel %vm1071, %v1073, %v1069
    %v1075 = vmul.f32 1.0, %v1074
    %v1076 = vrcp.pop %v1044
    %v1077 = vmul.f32 %v1044, %v1076
    %v1078 = vsub.f32 1.0, %v1077
    %v1079 = vmul.f32 %v1076, %v1078
    %v1080 = vadd.f32 %v1076, %v1079
    %vm1081 = vweird.f32 %v1044
    %vm1082 = vweird.f32 %v1076
    %vm1083 = vmor %vm1081, %vm1082
    %v1084 = vsel %vm1083, %v1076, %v1080
    %v1085 = vand.u32 2147483647, %v1044
    %vm1086 = vcmp.eq.f32.partialorder %v1085, 8.507059e+37
    %v1087 = vand.u32 %v1044, 2147483648
    %v1088 = vor.u32 1.1754944e-38, %v1087
    %v1089 = vsel %vm1086, %v1088, %v1084
    %v1090 = vmul.f32 1.0, %v1089
    %v1091 = vrcp.pop %v1045
    %v1092 = vmul.f32 %v1045, %v1091
    %v1093 = vsub.f32 1.0, %v1092
    %v1094 = vmul.f32 %v1091, %v1093
    %v1095 = vadd.f32 %v1091, %v1094
    %vm1096 = vweird.f32 %v1045
    %vm1097 = vweird.f32 %v1091
    %vm1098 = vmor %vm1096, %vm1097
    %v1099 = vsel %vm1098, %v1091, %v1095
    %v1100 = vand.u32 2147483647, %v1045
    %vm1101 = vcmp.eq.f32.partialorder %v1100, 8.507059e+37
    %v1102 = vand.u32 %v1045, 2147483648
    %v1103 = vor.u32 1.1754944e-38, %v1102
    %v1104 = vsel %vm1101, %v1103, %v1099
    %v1105 = vmul.f32 1.0, %v1104
    %v1106 = vrcp.pop %v1046
    %v1107 = vmul.f32 %v1046, %v1106
    %v1108 = vsub.f32 1.0, %v1107
    %v1109 = vmul.f32 %v1106, %v1108
    %v1110 = vadd.f32 %v1106, %v1109
    %vm1111 = vweird.f32 %v1046
    %vm1112 = vweird.f32 %v1106
    %vm1113 = vmor %vm1111, %vm1112
    %v1114 = vsel %vm1113, %v1106, %v1110
    %v1115 = vand.u32 2147483647, %v1046
    %vm1116 = vcmp.eq.f32.partialorder %v1115, 8.507059e+37
    %v1117 = vand.u32 %v1046, 2147483648
    %v1118 = vor.u32 1.1754944e-38, %v1117
    %v1119 = vsel %vm1116, %v1118, %v1114
    %v1120 = vmul.f32 1.0, %v1119
    %v1121 = vrcp.pop %v1047
    %v1122 = vmul.f32 %v1047, %v1121
    %v1123 = vsub.f32 1.0, %v1122
    %v1124 = vmul.f32 %v1121, %v1123
    %v1125 = vadd.f32 %v1121, %v1124
    %vm1126 = vweird.f32 %v1047
    %vm1127 = vweird.f32 %v1121
    %vm1128 = vmor %vm1126, %vm1127
    %v1129 = vsel %vm1128, %v1121, %v1125
    %v1130 = vand.u32 2147483647, %v1047
    %vm1131 = vcmp.eq.f32.partialorder %v1130, 8.507059e+37
    %v1132 = vand.u32 %v1047, 2147483648
    %v1133 = vor.u32 1.1754944e-38, %v1132
    %v1134 = vsel %vm1131, %v1133, %v1129
    %v1135 = vmul.f32 1.0, %v1134
    %v1136 = vrcp.pop %v1048
    %v1137 = vmul.f32 %v1048, %v1136
    %v1138 = vsub.f32 1.0, %v1137
    %v1139 = vmul.f32 %v1136, %v1138
    %v1140 = vadd.f32 %v1136, %v1139
    %vm1141 = vweird.f32 %v1048
    %vm1142 = vweird.f32 %v1136
    %vm1143 = vmor %vm1141, %vm1142
    %v1144 = vsel %vm1143, %v1136, %v1140
    %v1145 = vand.u32 2147483647, %v1048
    %vm1146 = vcmp.eq.f32.partialorder %v1145, 8.507059e+37
    %v1147 = vand.u32 %v1048, 2147483648
    %v1148 = vor.u32 1.1754944e-38, %v1147
    %v1149 = vsel %vm1146, %v1148, %v1144
    %v1150 = vmul.f32 1.0, %v1149
    %v1151 = vrcp.pop %v1049
    %v1152 = vmul.f32 %v1049, %v1151
    %v1153 = vsub.f32 1.0, %v1152
    %v1154 = vmul.f32 %v1151, %v1153
    %v1155 = vadd.f32 %v1151, %v1154
    %vm1156 = vweird.f32 %v1049
    %vm1157 = vweird.f32 %v1151
    %vm1158 = vmor %vm1156, %vm1157
    %v1159 = vsel %vm1158, %v1151, %v1155
    %v1160 = vand.u32 2147483647, %v1049
    %vm1161 = vcmp.eq.f32.partialorder %v1160, 8.507059e+37
    %v1162 = vand.u32 %v1049, 2147483648
    %v1163 = vor.u32 1.1754944e-38, %v1162
    %v1164 = vsel %vm1161, %v1163, %v1159
    %v1165 = vmul.f32 1.0, %v1164
    %v1166 = vrcp.pop %v1050
    %v1167 = vmul.f32 %v1050, %v1166
    %v1168 = vsub.f32 1.0, %v1167
    %v1169 = vmul.f32 %v1166, %v1168
    %v1170 = vadd.f32 %v1166, %v1169
    %vm1171 = vweird.f32 %v1050
    %vm1172 = vweird.f32 %v1166
    %vm1173 = vmor %vm1171, %vm1172
    %v1174 = vsel %vm1173, %v1166, %v1170
    %v1175 = vand.u32 2147483647, %v1050
    %vm1176 = vcmp.eq.f32.partialorder %v1175, 8.507059e+37
    %v1177 = vand.u32 %v1050, 2147483648
    %v1178 = vor.u32 1.1754944e-38, %v1177
    %v1179 = vsel %vm1176, %v1178, %v1174
    %v1180 = vmul.f32 1.0, %v1179
    %v1181 = vrcp.pop %v1051
    %v1182 = vmul.f32 %v1051, %v1181
    %v1183 = vsub.f32 1.0, %v1182
    %v1184 = vmul.f32 %v1181, %v1183
    %v1185 = vadd.f32 %v1181, %v1184
    %vm1186 = vweird.f32 %v1051
    %vm1187 = vweird.f32 %v1181
    %vm1188 = vmor %vm1186, %vm1187
    %v1189 = vsel %vm1188, %v1181, %v1185
    %v1190 = vand.u32 2147483647, %v1051
    %vm1191 = vcmp.eq.f32.partialorder %v1190, 8.507059e+37
    %v1192 = vand.u32 %v1051, 2147483648
    %v1193 = vor.u32 1.1754944e-38, %v1192
    %v1194 = vsel %vm1191, %v1193, %v1189
    %v1195 = vmul.f32 1.0, %v1194
    %v1196 = vrcp.pop %v1052
    %v1197 = vmul.f32 %v1052, %v1196
    %v1198 = vsub.f32 1.0, %v1197
    %v1199 = vmul.f32 %v1196, %v1198
    %v1200 = vadd.f32 %v1196, %v1199
    %vm1201 = vweird.f32 %v1052
    %vm1202 = vweird.f32 %v1196
    %vm1203 = vmor %vm1201, %vm1202
    %v1204 = vsel %vm1203, %v1196, %v1200
    %v1205 = vand.u32 2147483647, %v1052
    %vm1206 = vcmp.eq.f32.partialorder %v1205, 8.507059e+37
    %v1207 = vand.u32 %v1052, 2147483648
    %v1208 = vor.u32 1.1754944e-38, %v1207
    %v1209 = vsel %vm1206, %v1208, %v1204
    %v1210 = vmul.f32 1.0, %v1209
    %v1211 = vrcp.pop %v1053
    %v1212 = vmul.f32 %v1053, %v1211
    %v1213 = vsub.f32 1.0, %v1212
    %v1214 = vmul.f32 %v1211, %v1213
    %v1215 = vadd.f32 %v1211, %v1214
    %vm1216 = vweird.f32 %v1053
    %vm1217 = vweird.f32 %v1211
    %vm1218 = vmor %vm1216, %vm1217
    %v1219 = vsel %vm1218, %v1211, %v1215
    %v1220 = vand.u32 2147483647, %v1053
    %vm1221 = vcmp.eq.f32.partialorder %v1220, 8.507059e+37
    %v1222 = vand.u32 %v1053, 2147483648
    %v1223 = vor.u32 1.1754944e-38, %v1222
    %v1224 = vsel %vm1221, %v1223, %v1219
    %v1225 = vmul.f32 1.0, %v1224
    %v1226 = vrcp.pop %v1054
    %v1227 = vmul.f32 %v1054, %v1226
    %v1228 = vsub.f32 1.0, %v1227
    %v1229 = vmul.f32 %v1226, %v1228
    %v1230 = vadd.f32 %v1226, %v1229
    %vm1231 = vweird.f32 %v1054
    %vm1232 = vweird.f32 %v1226
    %vm1233 = vmor %vm1231, %vm1232
    %v1234 = vsel %vm1233, %v1226, %v1230
    %v1235 = vand.u32 2147483647, %v1054
    %vm1236 = vcmp.eq.f32.partialorder %v1235, 8.507059e+37
    %v1237 = vand.u32 %v1054, 2147483648
    %v1238 = vor.u32 1.1754944e-38, %v1237
    %v1239 = vsel %vm1236, %v1238, %v1234
    %v1240 = vmul.f32 1.0, %v1239
    %v1241 = vrcp.pop %v1055
    %v1242 = vmul.f32 %v1055, %v1241
    %v1243 = vsub.f32 1.0, %v1242
    %v1244 = vmul.f32 %v1241, %v1243
    %v1245 = vadd.f32 %v1241, %v1244
    %vm1246 = vweird.f32 %v1055
    %vm1247 = vweird.f32 %v1241
    %vm1248 = vmor %vm1246, %vm1247
    %v1249 = vsel %vm1248, %v1241, %v1245
    %v1250 = vand.u32 2147483647, %v1055
    %vm1251 = vcmp.eq.f32.partialorder %v1250, 8.507059e+37
    %v1252 = vand.u32 %v1055, 2147483648
    %v1253 = vor.u32 1.1754944e-38, %v1252
    %v1254 = vsel %vm1251, %v1253, %v1249
    %v1255 = vmul.f32 1.0, %v1254
    %v1256 = vrcp.pop %v1056
    %v1257 = vmul.f32 %v1056, %v1256
    %v1258 = vsub.f32 1.0, %v1257
    %v1259 = vmul.f32 %v1256, %v1258
    %v1260 = vadd.f32 %v1256, %v1259
    %vm1261 = vweird.f32 %v1056
    %vm1262 = vweird.f32 %v1256
    %vm1263 = vmor %vm1261, %vm1262
    %v1264 = vsel %vm1263, %v1256, %v1260
    %v1265 = vand.u32 2147483647, %v1056
    %vm1266 = vcmp.eq.f32.partialorder %v1265, 8.507059e+37
    %v1267 = vand.u32 %v1056, 2147483648
    %v1268 = vor.u32 1.1754944e-38, %v1267
    %v1269 = vsel %vm1266, %v1268, %v1264
    %v1270 = vmul.f32 1.0, %v1269
    %v1271 = vrcp.pop %v1057
    %v1272 = vmul.f32 %v1057, %v1271
    %v1273 = vsub.f32 1.0, %v1272
    %v1274 = vmul.f32 %v1271, %v1273
    %v1275 = vadd.f32 %v1271, %v1274
    %vm1276 = vweird.f32 %v1057
    %vm1277 = vweird.f32 %v1271
    %vm1278 = vmor %vm1276, %vm1277
    %v1279 = vsel %vm1278, %v1271, %v1275
    %v1280 = vand.u32 2147483647, %v1057
    %vm1281 = vcmp.eq.f32.partialorder %v1280, 8.507059e+37
    %v1282 = vand.u32 %v1057, 2147483648
    %v1283 = vor.u32 1.1754944e-38, %v1282
    %v1284 = vsel %vm1281, %v1283, %v1279
    %v1285 = vmul.f32 1.0, %v1284
    %v1286 = vrcp.pop %v1058
    %v1287 = vmul.f32 %v1058, %v1286
    %v1288 = vsub.f32 1.0, %v1287
    %v1289 = vmul.f32 %v1286, %v1288
    %v1290 = vadd.f32 %v1286, %v1289
    %vm1291 = vweird.f32 %v1058
    %vm1292 = vweird.f32 %v1286
    %vm1293 = vmor %vm1291, %vm1292
    %v1294 = vsel %vm1293, %v1286, %v1290
    %v1295 = vand.u32 2147483647, %v1058
    %vm1296 = vcmp.eq.f32.partialorder %v1295, 8.507059e+37
    %v1297 = vand.u32 %v1058, 2147483648
    %v1298 = vor.u32 1.1754944e-38, %v1297
    %v1299 = vsel %vm1296, %v1298, %v1294
    %v1300 = vmul.f32 1.0, %v1299
    %v1301 = vrcp.pop %v1059
    %v1302 = vmul.f32 %v1059, %v1301
    %v1303 = vsub.f32 1.0, %v1302
    %v1304 = vmul.f32 %v1301, %v1303
    %v1305 = vadd.f32 %v1301, %v1304
    %vm1306 = vweird.f32 %v1059
    %vm1307 = vweird.f32 %v1301
    %vm1308 = vmor %vm1306, %vm1307
    %v1309 = vsel %vm1308, %v1301, %v1305
    %v1310 = vand.u32 2147483647, %v1059
    %vm1311 = vcmp.eq.f32.partialorder %v1310, 8.507059e+37
    %v1312 = vand.u32 %v1059, 2147483648
    %v1313 = vor.u32 1.1754944e-38, %v1312
    %v1314 = vsel %vm1311, %v1313, %v1309
    %v1315 = vmul.f32 1.0, %v1314
    %v1316 = vrcp.pop %v1060
    %v1317 = vmul.f32 %v1060, %v1316
    %v1318 = vsub.f32 1.0, %v1317
    %v1319 = vmul.f32 %v1316, %v1318
    %v1320 = vadd.f32 %v1316, %v1319
    %vm1321 = vweird.f32 %v1060
    %vm1322 = vweird.f32 %v1316
    %vm1323 = vmor %vm1321, %vm1322
    %v1324 = vsel %vm1323, %v1316, %v1320
    %v1325 = vand.u32 2147483647, %v1060
    %vm1326 = vcmp.eq.f32.partialorder %v1325, 8.507059e+37
    %v1327 = vand.u32 %v1060, 2147483648
    %v1328 = vor.u32 1.1754944e-38, %v1327
    %v1329 = vsel %vm1326, %v1328, %v1324
    %v1330 = vmul.f32 1.0, %v1329
    %v1349 = vrot.slane %v1090, 7
    %v1350 = vrot.slane %v1105, 6
    %v1351 = vrot.slane %v1120, 5
    %v1352 = vrot.slane %v1135, 4
    %v1353 = vrot.slane %v1150, 3
    %v1354 = vrot.slane %v1165, 2
    %v1355 = vrot.slane %v1180, 1
    %v1356 = vrot.slane %v1210, 7
    %v1357 = vrot.slane %v1225, 6
    %v1358 = vrot.slane %v1240, 5
    %v1359 = vrot.slane %v1255, 4
    %v1360 = vrot.slane %v1270, 3
    %v1361 = vrot.slane %v1285, 2
    %v1362 = vrot.slane %v1300, 1
    %v1363 = vrot.slane %v1330, 7
    %vm1364 = vcmask 1040384
    %v1365 = vsel %vm1364, %v1075, %v1349
    %vm1366 = vcmask 1042434
    %v1367 = vsel %vm1366, %v1350, %v1351
    %vm1368 = vcmask 1041408
    %v1369 = vsel %vm1368, %v1365, %v1367
    %vm1370 = vcmask 1044484
    %v1371 = vsel %vm1370, %v1352, %v1353
    %vm1372 = vcmask 1046534
    %v1373 = vsel %vm1372, %v1354, %v1355
    %vm1374 = vcmask 1045508
    %v1375 = vsel %vm1374, %v1371, %v1373
    %vm1376 = vcmask 1043456
    %v1377 = vsel %vm1376, %v1369, %v1375
    %v1378 = vsel %vm1364, %v1195, %v1356
    %v1379 = vsel %vm1366, %v1357, %v1358
    %v1380 = vsel %vm1368, %v1378, %v1379
    %v1381 = vsel %vm1370, %v1359, %v1360
    %v1382 = vsel %vm1372, %v1361, %v1362
    %v1383 = vsel %vm1374, %v1381, %v1382
    %v1384 = vsel %vm1376, %v1380, %v1383
    %v1385 = vsel %vm1364, %v1315, %v1363
    %1389 = vst [vmem:[#allocation8] sm:$0xff] %v1377
    %1390 = vst [vmem:[#allocation8 + $0x8] sm:$0xff] %v1384
    %v1391 = vlaneseq
    %vm1392 = vcmp.ge.s32.totalorder %v1391, 0
    %vm1393 = vcmp.lt.s32.totalorder %v1391, 256
    %vm1394 = vmand %vm1392, %vm1393
    %1395 = vst.msk [vmem:[#allocation8 + $0x10] sm:$0x3] %vm1394, %v1385
    // Predicated region
    $region26: #{conv1x1_sigmoid.1} parent=1 // pred_check
      _
    $region27: #{conv1x1_sigmoid.1} parent=1 // pred_check_branch
      %1397 = sbr.rel (0) target = $region29
    $region28: #{conv1x1_sigmoid.1} parent=1 // pred_region
      %1399 = vsyncadd [#allocation4], 0
      %s1401 = sshll.u32 [#allocation8], 4
      %s1402 = int_to_ptr.vmem [resolvable:$true] %s1401
      %s1403 = sshll.u32 %s3, 4
      %s1404 = int_to_ptr.hbm [resolvable:$true] %s1403
      %1406 = dma.vmem_to_hbm [thread:$0]  %s1402, 288, %s1404, [#allocation4]
    $region29: #{conv1x1_sigmoid.1} parent=1 // pred_fallthru
      _
    // Predicated region
    $region30: #{conv1x1_sigmoid.1} parent=1 // pred_check
      _
    $region31: #{conv1x1_sigmoid.1} parent=1 // pred_check_branch
      %1408 = sbr.rel (0) target = $region33
    $region32: #{conv1x1_sigmoid.1} parent=1 // pred_region
      %1410 = dma.done [#allocation4], 288
    $region33: #{conv1x1_sigmoid.1} parent=1 // pred_fallthru
      _
    %1411 = vsyncpa [#allocation3], 1
    %1412 = vsyncpa [#allocation6], 1
    %1413 = vsyncpa [#allocation4], 1

</llo_original>
